<compile_context>
chip_gen: v7x
topology: tpu7x:2x2x1
jax: 0.10.0
libtpu: 0.0.40
codegen_flags: <defaults>
</compile_context>

<pallas_src>
import jax
import jax.numpy as jnp
from jax import lax
from jax.experimental import pallas as pl
from jax.experimental.pallas import tpu as pltpu


def _cconv1d_kernel(xr_ref, xi_ref, wr_ref, wi_ref, ws_ref, rb_ref, ib_ref,
                    yr_ref, yi_ref):
    """One batch-block of the complex conv1d.

    xr_ref/xi_ref : (B, Cin, Lp)     f32   real / imag input rows (padded L)
    wr_ref/wi_ref : (Cout, K*Cin)    bf16  tap-fused weights
    ws_ref        : (Cout, K*Cin)    bf16  wr + wi (Gauss 3-mult trick)
    rb_ref        : (Cout, 1)        f32   folded real bias (br - bi)
    ib_ref        : (Cout, 1)        f32   folded imag bias (br + bi)
    yr_ref/yi_ref : (B, Cout, Lout)  f32   real / imag outputs
    """
    b_blk, cin, _ = xr_ref.shape
    _, cout, lout = yr_ref.shape
    k_taps = wr_ref.shape[1] // cin

    xr = xr_ref[...]
    xi = xi_ref[...]

    # Build one fat tap-fused RHS covering the whole batch block:
    #   row  index = k*Cin + c   (contraction depth K*Cin)
    #   lane index = b*Lout + l  (lane-dense: B_blk*Lout columns per dot)
    cols_r, cols_i = [], []
    for b in range(b_blk):                       # static, small unroll
        cols_r.append(jnp.concatenate(
            [xr[b, :, k:k + lout] for k in range(k_taps)], axis=0))
        cols_i.append(jnp.concatenate(
            [xi[b, :, k:k + lout] for k in range(k_taps)], axis=0))
    xr_s = jnp.concatenate(cols_r, axis=1)       # (K*Cin, B*Lout) f32
    xi_s = jnp.concatenate(cols_i, axis=1)
    xs_s = (xr_s + xi_s).astype(jnp.bfloat16)    # sum in f32, matmul in bf16
    xr_s = xr_s.astype(jnp.bfloat16)
    xi_s = xi_s.astype(jnp.bfloat16)

    # Gauss 3-multiplication complex product (25% fewer MXU pushes):
    #   real = t1 - t2,  imag = t3 - t1 - t2
    t1 = jnp.dot(wr_ref[...], xr_s, preferred_element_type=jnp.float32)
    t2 = jnp.dot(wi_ref[...], xi_s, preferred_element_type=jnp.float32)
    t3 = jnp.dot(ws_ref[...], xs_s, preferred_element_type=jnp.float32)

    real = t1 - t2 + rb_ref[...]                 # (Cout, B*Lout)
    imag = t3 - t1 - t2 + ib_ref[...]

    for b in range(b_blk):
        yr_ref[b] = real[:, b * lout:(b + 1) * lout]
        yi_ref[b] = imag[:, b * lout:(b + 1) * lout]


def complex_conv1d(x, wr, br, wi, bi, *, stride=1, padding=0, dilation=1,
                   groups=1):
    """ComplexConv1d forward.

    x  : complex64 (N, Cin, L)
    wr : (Cout, Cin, K) rconv weight     br : (Cout,) rconv bias
    wi : (Cout, Cin, K) iconv weight     bi : (Cout,) iconv bias
    returns complex64 (N, Cout, Lout)
    """
    assert stride == 1 and dilation == 1 and groups == 1, \
        "only the module defaults are implemented"

    N, Cin, L = x.shape
    Cout, Cin_w, K = wr.shape
    assert Cin_w == Cin

    xr = jnp.real(x).astype(jnp.float32)
    xi = jnp.imag(x).astype(jnp.float32)
    if padding:
        pad = ((0, 0), (0, 0), (padding, padding))
        xr = jnp.pad(xr, pad)
        xi = jnp.pad(xi, pad)
    Lp = L + 2 * padding
    Lout = Lp - K + 1
    assert Lout > 0

    # Batch block: make the per-dot lane width (B_blk * Lout) reasonably dense
    # and amortize per-grid-step overhead; cap the static unroll at 8.
    b_blk = max(1, min(N, 8, -(-512 // Lout)))
    n_blocks = -(-N // b_blk)
    n_pad = n_blocks * b_blk
    if n_pad != N:
        xr = jnp.pad(xr, ((0, n_pad - N), (0, 0), (0, 0)))
        xi = jnp.pad(xi, ((0, n_pad - N), (0, 0), (0, 0)))

    # Tap-fused weight layout: W2[o, k*Cin + c] = w[o, c, k]  -> (Cout, K*Cin).
    # bf16 operands, f32 accumulation on the MXU.
    wr2 = jnp.transpose(wr, (0, 2, 1)).reshape(Cout, K * Cin).astype(jnp.float32)
    wi2 = jnp.transpose(wi, (0, 2, 1)).reshape(Cout, K * Cin).astype(jnp.float32)
    ws2 = (wr2 + wi2).astype(jnp.bfloat16)       # Gauss term weight
    wr2 = wr2.astype(jnp.bfloat16)
    wi2 = wi2.astype(jnp.bfloat16)

    # Fold the two conv biases once: real part gets br - bi, imag br + bi.
    rb = (br - bi).astype(jnp.float32).reshape(Cout, 1)
    ib = (br + bi).astype(jnp.float32).reshape(Cout, 1)

    # Rough per-step VMEM footprint (double-buffered ins/outs + resident W),
    # clamped so it is safe on v7x's 64 MiB VMEM as well as v5e/v6e.
    step_bytes = (2 * 2 * b_blk * Cin * Lp * 4
                  + 2 * 2 * b_blk * Cout * Lout * 4
                  + 3 * Cout * K * Cin * 2 + 2 * Cout * 4)
    vmem_limit = int(min(max(2 * step_bytes, 16 << 20), 48 << 20))

    yr, yi = pl.pallas_call(
        _cconv1d_kernel,
        out_shape=(jax.ShapeDtypeStruct((n_pad, Cout, Lout), jnp.float32),
                   jax.ShapeDtypeStruct((n_pad, Cout, Lout), jnp.float32)),
        grid=(n_blocks,),
        in_specs=[
            pl.BlockSpec((b_blk, Cin, Lp), lambda n: (n, 0, 0)),    # xr
            pl.BlockSpec((b_blk, Cin, Lp), lambda n: (n, 0, 0)),    # xi
            pl.BlockSpec((Cout, K * Cin), lambda n: (0, 0)),        # wr (resident)
            pl.BlockSpec((Cout, K * Cin), lambda n: (0, 0)),        # wi (resident)
            pl.BlockSpec((Cout, K * Cin), lambda n: (0, 0)),        # wr+wi (resident)
            pl.BlockSpec((Cout, 1), lambda n: (0, 0)),              # br - bi
            pl.BlockSpec((Cout, 1), lambda n: (0, 0)),              # br + bi
        ],
        out_specs=(
            pl.BlockSpec((b_blk, Cout, Lout), lambda n: (n, 0, 0)),
            pl.BlockSpec((b_blk, Cout, Lout), lambda n: (n, 0, 0)),
        ),
        compiler_params=pltpu.CompilerParams(
            dimension_semantics=("parallel",),
            vmem_limit_bytes=vmem_limit),
    )(xr, xi, wr2, wi2, ws2, rb, ib)

    if n_pad != N:
        yr = yr[:N]
        yi = yi[:N]

    # Pure pack into complex64 (no broadcasted complex add).
    return lax.complex(yr, yi)


# ----------------------------- reference ------------------------------------

def _ref_conv1d(x, w, b):
    N, Cin, L = x.shape
    Cout, _, K = w.shape
    Lout = L - K + 1
    out = jnp.zeros((N, Cout, Lout), jnp.float32)
    for k in range(K):
        out = out + jnp.einsum('oc,ncl->nol', w[:, :, k], x[:, :, k:k + Lout])
    return out + b.reshape(1, -1, 1)


def _reference(x, wr, br, wi, bi):
    xr = jnp.real(x).astype(jnp.float32)
    xi = jnp.imag(x).astype(jnp.float32)
    yr = _ref_conv1d(xr, wr, br) - _ref_conv1d(xi, wi, bi)
    yi = _ref_conv1d(xi, wr, br) + _ref_conv1d(xr, wi, bi)
    return (yr + 1j * yi).astype(jnp.complex64)


if __name__ == "__main__":
    key = jax.random.PRNGKey(0)
    N, Cin, Cout, L, K = 2, 4, 8, 16, 3

    k1, k2, k3, k4, k5, k6 = jax.random.split(key, 6)
    x = (jax.random.normal(k1, (N, Cin, L), dtype=jnp.float32)
         + 1j * jax.random.normal(k2, (N, Cin, L), dtype=jnp.float32)
         ).astype(jnp.complex64)

    # PyTorch-style Conv1d init scale: U(-sqrt(1/(Cin*K)), +sqrt(1/(Cin*K))).
    bound = 1.0 / (Cin * K) ** 0.5
    wr = jax.random.uniform(k3, (Cout, Cin, K), jnp.float32, -bound, bound)
    br = jax.random.uniform(k4, (Cout,), jnp.float32, -bound, bound)
    wi = jax.random.uniform(k5, (Cout, Cin, K), jnp.float32, -bound, bound)
    bi = jax.random.uniform(k6, (Cout,), jnp.float32, -bound, bound)

    out = complex_conv1d(x, wr, br, wi, bi)
    out = jax.block_until_ready(out)

    ref = _reference(x, wr, br, wi, bi)
    assert out.shape == (N, Cout, L - K + 1) and out.dtype == jnp.complex64
    # bf16 MXU operands (f32 accumulate) -> slightly looser tolerance than f32.
    assert jnp.allclose(out, ref, atol=5e-2, rtol=5e-2)

    print("KERNEL_OK")
</pallas_src>

<mosaic_0001>
module attributes {stable_mosaic.version = 11 : i64} {
  func.func @_cconv1d_kernel(%arg0: i32, %arg1: memref<2x4x16xf32, #tpu.memory_space<vmem>>, %arg2: memref<2x4x16xf32, #tpu.memory_space<vmem>>, %arg3: memref<8x12xbf16, #tpu.memory_space<vmem>>, %arg4: memref<8x12xbf16, #tpu.memory_space<vmem>>, %arg5: memref<8x12xbf16, #tpu.memory_space<vmem>>, %arg6: memref<8x1xf32, #tpu.memory_space<vmem>>, %arg7: memref<8x1xf32, #tpu.memory_space<vmem>>, %arg8: memref<2x8x14xf32, #tpu.memory_space<vmem>>, %arg9: memref<2x8x14xf32, #tpu.memory_space<vmem>>) attributes {dimension_semantics = [#tpu.dimension_semantics<parallel>], iteration_bounds = array<i64: 1>, scalar_prefetch = 0 : i64, scratch_operands = 0 : i64, tpu.core_type = #tpu.core_type<tc>, window_params = [{transform_indices = @transform_0, window_bounds = array<i64: 2, 4, 16>}, {transform_indices = @transform_1, window_bounds = array<i64: 2, 4, 16>}, {pipeline_mode = #tpu.pipeline_mode<synchronous>, transform_indices = @transform_2, window_bounds = array<i64: 8, 12>}, {pipeline_mode = #tpu.pipeline_mode<synchronous>, transform_indices = @transform_3, window_bounds = array<i64: 8, 12>}, {pipeline_mode = #tpu.pipeline_mode<synchronous>, transform_indices = @transform_4, window_bounds = array<i64: 8, 12>}, {pipeline_mode = #tpu.pipeline_mode<synchronous>, transform_indices = @transform_5, window_bounds = array<i64: 8, 1>}, {pipeline_mode = #tpu.pipeline_mode<synchronous>, transform_indices = @transform_6, window_bounds = array<i64: 8, 1>}, {transform_indices = @transform_7, window_bounds = array<i64: 2, 8, 14>}, {transform_indices = @transform_8, window_bounds = array<i64: 2, 8, 14>}]} {
    %c0 = arith.constant 0 : index
    %c0_0 = arith.constant 0 : index
    %c0_1 = arith.constant 0 : index
    %0 = vector.load %arg1[%c0, %c0_0, %c0_1] : memref<2x4x16xf32, #tpu.memory_space<vmem>>, vector<2x4x16xf32>
    %c0_2 = arith.constant 0 : index
    %c0_3 = arith.constant 0 : index
    %c0_4 = arith.constant 0 : index
    %1 = vector.load %arg2[%c0_2, %c0_3, %c0_4] : memref<2x4x16xf32, #tpu.memory_space<vmem>>, vector<2x4x16xf32>
    %2 = vector.extract_strided_slice %0 {offsets = [0, 0, 0], sizes = [1, 4, 14], strides = [1, 1, 1]} : vector<2x4x16xf32> to vector<1x4x14xf32>
    %3 = vector.shape_cast %2 : vector<1x4x14xf32> to vector<4x14xf32>
    %4 = vector.extract_strided_slice %0 {offsets = [0, 0, 1], sizes = [1, 4, 14], strides = [1, 1, 1]} : vector<2x4x16xf32> to vector<1x4x14xf32>
    %5 = vector.shape_cast %4 : vector<1x4x14xf32> to vector<4x14xf32>
    %6 = vector.extract_strided_slice %0 {offsets = [0, 0, 2], sizes = [1, 4, 14], strides = [1, 1, 1]} : vector<2x4x16xf32> to vector<1x4x14xf32>
    %7 = vector.shape_cast %6 : vector<1x4x14xf32> to vector<4x14xf32>
    %8 = tpu.concatenate %3, %5, %7 in 0 : vector<4x14xf32>, vector<4x14xf32>, vector<4x14xf32> -> vector<12x14xf32>
    %9 = vector.extract_strided_slice %1 {offsets = [0, 0, 0], sizes = [1, 4, 14], strides = [1, 1, 1]} : vector<2x4x16xf32> to vector<1x4x14xf32>
    %10 = vector.shape_cast %9 : vector<1x4x14xf32> to vector<4x14xf32>
    %11 = vector.extract_strided_slice %1 {offsets = [0, 0, 1], sizes = [1, 4, 14], strides = [1, 1, 1]} : vector<2x4x16xf32> to vector<1x4x14xf32>
    %12 = vector.shape_cast %11 : vector<1x4x14xf32> to vector<4x14xf32>
    %13 = vector.extract_strided_slice %1 {offsets = [0, 0, 2], sizes = [1, 4, 14], strides = [1, 1, 1]} : vector<2x4x16xf32> to vector<1x4x14xf32>
    %14 = vector.shape_cast %13 : vector<1x4x14xf32> to vector<4x14xf32>
    %15 = tpu.concatenate %10, %12, %14 in 0 : vector<4x14xf32>, vector<4x14xf32>, vector<4x14xf32> -> vector<12x14xf32>
    %16 = vector.extract_strided_slice %0 {offsets = [1, 0, 0], sizes = [1, 4, 14], strides = [1, 1, 1]} : vector<2x4x16xf32> to vector<1x4x14xf32>
    %17 = vector.shape_cast %16 : vector<1x4x14xf32> to vector<4x14xf32>
    %18 = vector.extract_strided_slice %0 {offsets = [1, 0, 1], sizes = [1, 4, 14], strides = [1, 1, 1]} : vector<2x4x16xf32> to vector<1x4x14xf32>
    %19 = vector.shape_cast %18 : vector<1x4x14xf32> to vector<4x14xf32>
    %20 = vector.extract_strided_slice %0 {offsets = [1, 0, 2], sizes = [1, 4, 14], strides = [1, 1, 1]} : vector<2x4x16xf32> to vector<1x4x14xf32>
    %21 = vector.shape_cast %20 : vector<1x4x14xf32> to vector<4x14xf32>
    %22 = tpu.concatenate %17, %19, %21 in 0 : vector<4x14xf32>, vector<4x14xf32>, vector<4x14xf32> -> vector<12x14xf32>
    %23 = vector.extract_strided_slice %1 {offsets = [1, 0, 0], sizes = [1, 4, 14], strides = [1, 1, 1]} : vector<2x4x16xf32> to vector<1x4x14xf32>
    %24 = vector.shape_cast %23 : vector<1x4x14xf32> to vector<4x14xf32>
    %25 = vector.extract_strided_slice %1 {offsets = [1, 0, 1], sizes = [1, 4, 14], strides = [1, 1, 1]} : vector<2x4x16xf32> to vector<1x4x14xf32>
    %26 = vector.shape_cast %25 : vector<1x4x14xf32> to vector<4x14xf32>
    %27 = vector.extract_strided_slice %1 {offsets = [1, 0, 2], sizes = [1, 4, 14], strides = [1, 1, 1]} : vector<2x4x16xf32> to vector<1x4x14xf32>
    %28 = vector.shape_cast %27 : vector<1x4x14xf32> to vector<4x14xf32>
    %29 = tpu.concatenate %24, %26, %28 in 0 : vector<4x14xf32>, vector<4x14xf32>, vector<4x14xf32> -> vector<12x14xf32>
    %30 = tpu.concatenate %8, %22 in 1 : vector<12x14xf32>, vector<12x14xf32> -> vector<12x28xf32>
    %31 = tpu.concatenate %15, %29 in 1 : vector<12x14xf32>, vector<12x14xf32> -> vector<12x28xf32>
    %32 = arith.addf %30, %31 : vector<12x28xf32>
    %33 = arith.truncf %32 : vector<12x28xf32> to vector<12x28xbf16>
    %34 = arith.truncf %30 : vector<12x28xf32> to vector<12x28xbf16>
    %35 = arith.truncf %31 : vector<12x28xf32> to vector<12x28xbf16>
    %c0_5 = arith.constant 0 : index
    %c0_6 = arith.constant 0 : index
    %36 = vector.load %arg3[%c0_5, %c0_6] : memref<8x12xbf16, #tpu.memory_space<vmem>>, vector<8x12xbf16>
    %cst = arith.constant dense<0.000000e+00> : vector<8x28xf32>
    %37 = tpu.matmul %36, %34, %cst {dimension_numbers = #tpu.dot_dimension_numbers<[1], [0], [0], [1], [0, 0, 1, 1], [], []>} : vector<8x12xbf16>, vector<12x28xbf16>, vector<8x28xf32> -> vector<8x28xf32>
    %c0_7 = arith.constant 0 : index
    %c0_8 = arith.constant 0 : index
    %38 = vector.load %arg4[%c0_7, %c0_8] : memref<8x12xbf16, #tpu.memory_space<vmem>>, vector<8x12xbf16>
    %cst_9 = arith.constant dense<0.000000e+00> : vector<8x28xf32>
    %39 = tpu.matmul %38, %35, %cst_9 {dimension_numbers = #tpu.dot_dimension_numbers<[1], [0], [0], [1], [0, 0, 1, 1], [], []>} : vector<8x12xbf16>, vector<12x28xbf16>, vector<8x28xf32> -> vector<8x28xf32>
    %c0_10 = arith.constant 0 : index
    %c0_11 = arith.constant 0 : index
    %40 = vector.load %arg5[%c0_10, %c0_11] : memref<8x12xbf16, #tpu.memory_space<vmem>>, vector<8x12xbf16>
    %cst_12 = arith.constant dense<0.000000e+00> : vector<8x28xf32>
    %41 = tpu.matmul %40, %33, %cst_12 {dimension_numbers = #tpu.dot_dimension_numbers<[1], [0], [0], [1], [0, 0, 1, 1], [], []>} : vector<8x12xbf16>, vector<12x28xbf16>, vector<8x28xf32> -> vector<8x28xf32>
    %42 = arith.subf %37, %39 : vector<8x28xf32>
    %c0_13 = arith.constant 0 : index
    %c0_14 = arith.constant 0 : index
    %43 = vector.load %arg6[%c0_13, %c0_14] : memref<8x1xf32, #tpu.memory_space<vmem>>, vector<8x1xf32>
    %44 = vector.broadcast %43 : vector<8x1xf32> to vector<8x28xf32>
    %45 = arith.addf %42, %44 : vector<8x28xf32>
    %46 = arith.subf %41, %37 : vector<8x28xf32>
    %47 = arith.subf %46, %39 : vector<8x28xf32>
    %c0_15 = arith.constant 0 : index
    %c0_16 = arith.constant 0 : index
    %48 = vector.load %arg7[%c0_15, %c0_16] : memref<8x1xf32, #tpu.memory_space<vmem>>, vector<8x1xf32>
    %49 = vector.broadcast %48 : vector<8x1xf32> to vector<8x28xf32>
    %50 = arith.addf %47, %49 : vector<8x28xf32>
    %51 = vector.extract_strided_slice %45 {offsets = [0, 0], sizes = [8, 14], strides = [1, 1]} : vector<8x28xf32> to vector<8x14xf32>
    %c0_17 = arith.constant 0 : index
    %c0_18 = arith.constant 0 : index
    %c0_19 = arith.constant 0 : index
    %52 = vector.load %arg8[%c0_17, %c0_18, %c0_19] : memref<2x8x14xf32, #tpu.memory_space<vmem>>, vector<1x8x14xf32>
    %53 = vector.shape_cast %52 : vector<1x8x14xf32> to vector<8x14xf32>
    %54 = vector.shape_cast %51 : vector<8x14xf32> to vector<1x8x14xf32>
    tpu.vector_store %arg8[%c0_17, %c0_18, %c0_19], %54 {strides = array<i32>} : memref<2x8x14xf32, #tpu.memory_space<vmem>>, vector<1x8x14xf32>,
    %55 = vector.extract_strided_slice %50 {offsets = [0, 0], sizes = [8, 14], strides = [1, 1]} : vector<8x28xf32> to vector<8x14xf32>
    %c0_20 = arith.constant 0 : index
    %c0_21 = arith.constant 0 : index
    %c0_22 = arith.constant 0 : index
    %56 = vector.load %arg9[%c0_20, %c0_21, %c0_22] : memref<2x8x14xf32, #tpu.memory_space<vmem>>, vector<1x8x14xf32>
    %57 = vector.shape_cast %56 : vector<1x8x14xf32> to vector<8x14xf32>
    %58 = vector.shape_cast %55 : vector<8x14xf32> to vector<1x8x14xf32>
    tpu.vector_store %arg9[%c0_20, %c0_21, %c0_22], %58 {strides = array<i32>} : memref<2x8x14xf32, #tpu.memory_space<vmem>>, vector<1x8x14xf32>,
    %59 = vector.extract_strided_slice %45 {offsets = [0, 14], sizes = [8, 14], strides = [1, 1]} : vector<8x28xf32> to vector<8x14xf32>
    %c1 = arith.constant 1 : index
    %c0_23 = arith.constant 0 : index
    %c0_24 = arith.constant 0 : index
    %60 = vector.load %arg8[%c1, %c0_23, %c0_24] : memref<2x8x14xf32, #tpu.memory_space<vmem>>, vector<1x8x14xf32>
    %61 = vector.shape_cast %60 : vector<1x8x14xf32> to vector<8x14xf32>
    %62 = vector.shape_cast %59 : vector<8x14xf32> to vector<1x8x14xf32>
    tpu.vector_store %arg8[%c1, %c0_23, %c0_24], %62 {strides = array<i32>} : memref<2x8x14xf32, #tpu.memory_space<vmem>>, vector<1x8x14xf32>,
    %63 = vector.extract_strided_slice %50 {offsets = [0, 14], sizes = [8, 14], strides = [1, 1]} : vector<8x28xf32> to vector<8x14xf32>
    %c1_25 = arith.constant 1 : index
    %c0_26 = arith.constant 0 : index
    %c0_27 = arith.constant 0 : index
    %64 = vector.load %arg9[%c1_25, %c0_26, %c0_27] : memref<2x8x14xf32, #tpu.memory_space<vmem>>, vector<1x8x14xf32>
    %65 = vector.shape_cast %64 : vector<1x8x14xf32> to vector<8x14xf32>
    %66 = vector.shape_cast %63 : vector<8x14xf32> to vector<1x8x14xf32>
    tpu.vector_store %arg9[%c1_25, %c0_26, %c0_27], %66 {strides = array<i32>} : memref<2x8x14xf32, #tpu.memory_space<vmem>>, vector<1x8x14xf32>,
    return
  }
  func.func @transform_0(%arg0: i32) -> (i32, i32, i32) {
    %c0_i32 = arith.constant 0 : i32
    %c0_i32_0 = arith.constant 0 : i32
    %c0_i32_1 = arith.constant 0 : i32
    return %arg0, %c0_i32, %c0_i32_0 : i32, i32, i32
  }
  func.func @transform_1(%arg0: i32) -> (i32, i32, i32) {
    %c0_i32 = arith.constant 0 : i32
    %c0_i32_0 = arith.constant 0 : i32
    %c0_i32_1 = arith.constant 0 : i32
    return %arg0, %c0_i32, %c0_i32_0 : i32, i32, i32
  }
  func.func @transform_2(%arg0: i32) -> (i32, i32) {
    %c0_i32 = arith.constant 0 : i32
    %c0_i32_0 = arith.constant 0 : i32
    %c0_i32_1 = arith.constant 0 : i32
    return %c0_i32, %c0_i32_0 : i32, i32
  }
  func.func @transform_3(%arg0: i32) -> (i32, i32) {
    %c0_i32 = arith.constant 0 : i32
    %c0_i32_0 = arith.constant 0 : i32
    %c0_i32_1 = arith.constant 0 : i32
    return %c0_i32, %c0_i32_0 : i32, i32
  }
  func.func @transform_4(%arg0: i32) -> (i32, i32) {
    %c0_i32 = arith.constant 0 : i32
    %c0_i32_0 = arith.constant 0 : i32
    %c0_i32_1 = arith.constant 0 : i32
    return %c0_i32, %c0_i32_0 : i32, i32
  }
  func.func @transform_5(%arg0: i32) -> (i32, i32) {
    %c0_i32 = arith.constant 0 : i32
    %c0_i32_0 = arith.constant 0 : i32
    %c0_i32_1 = arith.constant 0 : i32
    return %c0_i32, %c0_i32_0 : i32, i32
  }
  func.func @transform_6(%arg0: i32) -> (i32, i32) {
    %c0_i32 = arith.constant 0 : i32
    %c0_i32_0 = arith.constant 0 : i32
    %c0_i32_1 = arith.constant 0 : i32
    return %c0_i32, %c0_i32_0 : i32, i32
  }
  func.func @transform_7(%arg0: i32) -> (i32, i32, i32) {
    %c0_i32 = arith.constant 0 : i32
    %c0_i32_0 = arith.constant 0 : i32
    %c0_i32_1 = arith.constant 0 : i32
    return %arg0, %c0_i32, %c0_i32_0 : i32, i32, i32
  }
  func.func @transform_8(%arg0: i32) -> (i32, i32, i32) {
    %c0_i32 = arith.constant 0 : i32
    %c0_i32_0 = arith.constant 0 : i32
    %c0_i32_1 = arith.constant 0 : i32
    return %arg0, %c0_i32, %c0_i32_0 : i32, i32, i32
  }
}

</mosaic_0001>

<llo_original>
// kernel: tpu_custom_call.1
$region0: #{tpu_custom_call.1}
  #allocation0 [shape = 'u32[]', space=smem, size = 0x4, offset = 0x4, fixed_abs, tag = 'smem constant byte address 0x4 - core index']
  #allocation1 [shape = 'u32[144,128]{1,0:T(1,128)}', space=vmem, size = 0x12000, scoped, tag = 'internal scratch']
  %s0 = inlined_call_operand.vmem [shape: f32[2,4,16], index: 0, kind: input, shape index: {}]
  %s1 = inlined_call_operand.vmem [shape: f32[2,4,16], index: 1, kind: input, shape index: {}]
  %s2 = inlined_call_operand.vmem [shape: bf16[8,12], index: 2, kind: input, shape index: {}]
  %s3 = inlined_call_operand.vmem [shape: bf16[8,12], index: 3, kind: input, shape index: {}]
  %s4 = inlined_call_operand.vmem [shape: bf16[8,12], index: 4, kind: input, shape index: {}]
  %s5 = inlined_call_operand.vmem [shape: f32[8,1], index: 5, kind: input, shape index: {}]
  %s6 = inlined_call_operand.vmem [shape: f32[8,1], index: 6, kind: input, shape index: {}]
  %s7 = inlined_call_operand.hbm [shape: f32[2,8,14], index: 7, kind: output, shape index: {0}]
  %s8 = inlined_call_operand.hbm [shape: f32[2,8,14], index: 8, kind: output, shape index: {1}]
  %9 = xla_tuple %s7, %s8
  %s10 = sld [smem:[#allocation0]]
  $region46: #{tpu_custom_call.1} parent=0
    _
  %s12 = ssub.s32 1, %s10
  %s13 = scalar_select 0, %s12, %s10
  $region1: #{tpu_custom_call.1} parent=0
    #allocation2 [shape = 'u8[8192]{0}', space=vmem, size = 0x2000, scoped, tag = 'output window, operand 0, single buffered']
    #allocation3 [shape = 's32[1]{0}', space=sflag, size = 0x4, scoped, tag = 'scoped memory for tpu_custom_call.1']
    #allocation4 [shape = 'u8[8192]{0}', space=vmem, size = 0x2000, scoped, tag = 'output window, operand 1, single buffered']
    #allocation5 [shape = 's32[1]{0}', space=sflag, size = 0x4, scoped, tag = 'scoped memory for tpu_custom_call.1']
    %14 = vsyncpa [#allocation3], 0
    %15 = vsyncpa [#allocation5], 0
    // Predicated region
    $region2: #{tpu_custom_call.1} parent=1 // pred_check
      _
    $region3: #{tpu_custom_call.1} parent=1 // pred_check_branch
      %17 = sbr.rel (0) target = $region5
    $region4: #{tpu_custom_call.1} parent=1 // pred_region
      _
    $region5: #{tpu_custom_call.1} parent=1 // pred_fallthru
      _
    // Predicated region
    $region6: #{tpu_custom_call.1} parent=1 // pred_check
      _
    $region7: #{tpu_custom_call.1} parent=1 // pred_check_branch
      %19 = sbr.rel (0) target = $region9
    $region8: #{tpu_custom_call.1} parent=1 // pred_region
      _
    $region9: #{tpu_custom_call.1} parent=1 // pred_fallthru
      _
    // Predicated region
    $region10: #{tpu_custom_call.1} parent=1 // pred_check
      _
    $region11: #{tpu_custom_call.1} parent=1 // pred_check_branch
      %21 = sbr.rel (0) target = $region13
    $region12: #{tpu_custom_call.1} parent=1 // pred_region
      _
    $region13: #{tpu_custom_call.1} parent=1 // pred_fallthru
      _
    // Predicated region
    $region14: #{tpu_custom_call.1} parent=1 // pred_check
      _
    $region15: #{tpu_custom_call.1} parent=1 // pred_check_branch
      %23 = sbr.rel (0) target = $region17
    $region16: #{tpu_custom_call.1} parent=1 // pred_region
      _
    $region17: #{tpu_custom_call.1} parent=1 // pred_fallthru
      _
    // Predicated region
    $region18: #{tpu_custom_call.1} parent=1 // pred_check
      _
    $region19: #{tpu_custom_call.1} parent=1 // pred_check_branch
      %25 = sbr.rel (0) target = $region21
    $region20: #{tpu_custom_call.1} parent=1 // pred_region
      _
    $region21: #{tpu_custom_call.1} parent=1 // pred_fallthru
      _
    // Predicated region
    $region22: #{tpu_custom_call.1} parent=1 // pred_check
      _
    $region23: #{tpu_custom_call.1} parent=1 // pred_check_branch
      %27 = sbr.rel (0) target = $region25
    $region24: #{tpu_custom_call.1} parent=1 // pred_region
      _
    $region25: #{tpu_custom_call.1} parent=1 // pred_fallthru
      _
    // Predicated region
    $region26: #{tpu_custom_call.1} parent=1 // pred_check
      _
    $region27: #{tpu_custom_call.1} parent=1 // pred_check_branch
      %29 = sbr.rel (0) target = $region29
    $region28: #{tpu_custom_call.1} parent=1 // pred_region
      _
    $region29: #{tpu_custom_call.1} parent=1 // pred_fallthru
      _
    %v31 = vld [vmem:[%s0] sm:$0xf]
    %v32 = vld [vmem:[%s0 + $0x4] sm:$0xf]
    %v33 = vld [vmem:[%s1] sm:$0xf]
    %v34 = vld [vmem:[%s1 + $0x4] sm:$0xf]
    %v36 = vrot.slane %v31, 4
    %37 = vrot.lane.b32.xlu0 %v36, 127
    %v38 = vpop.permute.xlu0 %37
    %40 = vrot.lane.b32.xlu0 %v31, 126
    %v41 = vpop.permute.xlu0 %40
    %vm43 = vcmask 1043456
    %v44 = vsel %vm43, %v31, %v38
    %v46 = vrot.slane %v33, 4
    %47 = vrot.lane.b32.xlu0 %v46, 127
    %v48 = vpop.permute.xlu0 %47
    %50 = vrot.lane.b32.xlu0 %v33, 126
    %v51 = vpop.permute.xlu0 %50
    %v53 = vsel %vm43, %v33, %v48
    %v55 = vrot.slane %v32, 4
    %56 = vrot.lane.b32.xlu0 %v55, 127
    %v57 = vpop.permute.xlu0 %56
    %59 = vrot.lane.b32.xlu0 %v32, 126
    %v60 = vpop.permute.xlu0 %59
    %v61 = vsel %vm43, %v32, %v57
    %v63 = vrot.slane %v34, 4
    %64 = vrot.lane.b32.xlu0 %v63, 127
    %v65 = vpop.permute.xlu0 %64
    %67 = vrot.lane.b32.xlu0 %v34, 126
    %v68 = vpop.permute.xlu0 %67
    %v69 = vsel %vm43, %v34, %v65
    %71 = vrot.lane.b32.xlu0 %v61, 14
    %v72 = vpop.permute.xlu0 %71
    %73 = vrot.lane.b32.xlu0 %v60, 14
    %v74 = vpop.permute.xlu0 %73
    %vm77 = vcmask 113664
    %v78 = vsel %vm77, %v44, %v72
    %v79 = vsel %vm77, %v41, %v74
    %81 = vrot.lane.b32.xlu0 %v69, 14
    %v82 = vpop.permute.xlu0 %81
    %83 = vrot.lane.b32.xlu0 %v68, 14
    %v84 = vpop.permute.xlu0 %83
    %v87 = vsel %vm77, %v53, %v82
    %v88 = vsel %vm77, %v51, %v84
    %v89 = vadd.f32 %v78, %v87
    %v90 = vadd.f32 %v79, %v88
    %v91 = vpack.c.bf16 %v90, %v89
    %v92 = vpack.c.bf16 %v79, %v78
    %v93 = vpack.c.bf16 %v88, %v87
    %v94 = vld [vmem:[%s2] sm:$0xf]
    %vm95 = vcmask 97280
    %v97 = vsel %vm95, %v94, 0
    %vm99 = vcmask 1045504
    %v101 = vsel %vm99, %v92, 0
    %103 = vmatprep.subr.bf16.mxu0 0
    %104 = vmatpush1.bf16.msra.mxu0 %v101
    %105 = vmatprep.subr.bf16.mxu0 0
    %106 = vmatpush1.bf16.msra.mxu0 0
    %107 = vmatprep.subr.bf16.mxu0 0
    %108 = vmatpush1.bf16.msra.mxu0 0
    %109 = vmatprep.subr.bf16.mxu0 0
    %110 = vmatpush1.bf16.msra.mxu0 0
    %111 = vmatprep.subr.bf16.mxu0 0
    %112 = vmatpush1.bf16.msra.mxu0 0
    %113 = vmatprep.subr.bf16.mxu0 0
    %114 = vmatpush1.bf16.msra.mxu0 0
    %115 = vmatprep.subr.bf16.mxu0 0
    %116 = vmatpush1.bf16.msra.mxu0 0
    %117 = vmatprep.subr.bf16.mxu0 0
    %118 = vmatpush1.bf16.msra.mxu0 0
    %119 = vmatprep.subr.bf16.mxu0 0
    %120 = vmatpush1.bf16.msra.mxu0 0
    %121 = vmatprep.subr.bf16.mxu0 0
    %122 = vmatpush1.bf16.msra.mxu0 0
    %123 = vmatprep.subr.bf16.mxu0 0
    %124 = vmatpush1.bf16.msra.mxu0 0
    %125 = vmatprep.subr.bf16.mxu0 0
    %126 = vmatpush1.bf16.msra.mxu0 0
    %127 = vmatprep.subr.bf16.mxu0 0
    %128 = vmatpush1.bf16.msra.mxu0 0
    %129 = vmatprep.subr.bf16.mxu0 0
    %130 = vmatpush1.bf16.msra.mxu0 0
    %131 = vmatprep.subr.bf16.mxu0 0
    %132 = vmatpush1.bf16.msra.mxu0 0
    %133 = vmatprep.subr.bf16.mxu0 0
    %134 = vmatpush1.bf16.msra.mxu0 0
    %135 = vmatprep.mubr.bf16.mxu0 0
    %136 = vmatmul.mubr.bf16.gmra.mrb[0].mxu0 %v97
    %v137 = vpop.f32.mrb[0].mxu0
    %v138 = vadd.f32 0.0, %v137
    %v139 = vpop.f32.mrb[0].mxu0
    %v140 = vpop.f32.mrb[0].mxu0
    %v141 = vpop.f32.mrb[0].mxu0
    %142 = vdwg.mxu0
    %v143 = vld [vmem:[%s3] sm:$0xf]
    %v145 = vsel %vm95, %v143, 0
    %v148 = vsel %vm99, %v93, 0
    %150 = vmatprep.subr.bf16.mxu0 0
    %151 = vmatpush1.bf16.msra.mxu0 %v148
    %152 = vmatprep.subr.bf16.mxu0 0
    %153 = vmatpush1.bf16.msra.mxu0 0
    %154 = vmatprep.subr.bf16.mxu0 0
    %155 = vmatpush1.bf16.msra.mxu0 0
    %156 = vmatprep.subr.bf16.mxu0 0
    %157 = vmatpush1.bf16.msra.mxu0 0
    %158 = vmatprep.subr.bf16.mxu0 0
    %159 = vmatpush1.bf16.msra.mxu0 0
    %160 = vmatprep.subr.bf16.mxu0 0
    %161 = vmatpush1.bf16.msra.mxu0 0
    %162 = vmatprep.subr.bf16.mxu0 0
    %163 = vmatpush1.bf16.msra.mxu0 0
    %164 = vmatprep.subr.bf16.mxu0 0
    %165 = vmatpush1.bf16.msra.mxu0 0
    %166 = vmatprep.subr.bf16.mxu0 0
    %167 = vmatpush1.bf16.msra.mxu0 0
    %168 = vmatprep.subr.bf16.mxu0 0
    %169 = vmatpush1.bf16.msra.mxu0 0
    %170 = vmatprep.subr.bf16.mxu0 0
    %171 = vmatpush1.bf16.msra.mxu0 0
    %172 = vmatprep.subr.bf16.mxu0 0
    %173 = vmatpush1.bf16.msra.mxu0 0
    %174 = vmatprep.subr.bf16.mxu0 0
    %175 = vmatpush1.bf16.msra.mxu0 0
    %176 = vmatprep.subr.bf16.mxu0 0
    %177 = vmatpush1.bf16.msra.mxu0 0
    %178 = vmatprep.subr.bf16.mxu0 0
    %179 = vmatpush1.bf16.msra.mxu0 0
    %180 = vmatprep.subr.bf16.mxu0 0
    %181 = vmatpush1.bf16.msra.mxu0 0
    %182 = vmatprep.mubr.bf16.mxu0 0
    %183 = vmatmul.mubr.bf16.gmra.mrb[0].mxu0 %v145
    %v184 = vpop.f32.mrb[0].mxu0
    %v185 = vadd.f32 0.0, %v184
    %v186 = vpop.f32.mrb[0].mxu0
    %v187 = vpop.f32.mrb[0].mxu0
    %v188 = vpop.f32.mrb[0].mxu0
    %189 = vdwg.mxu0
    %v190 = vld [vmem:[%s4] sm:$0xf]
    %v192 = vsel %vm95, %v190, 0
    %v195 = vsel %vm99, %v91, 0
    %197 = vmatprep.subr.bf16.mxu0 0
    %198 = vmatpush1.bf16.msra.mxu0 %v195
    %199 = vmatprep.subr.bf16.mxu0 0
    %200 = vmatpush1.bf16.msra.mxu0 0
    %201 = vmatprep.subr.bf16.mxu0 0
    %202 = vmatpush1.bf16.msra.mxu0 0
    %203 = vmatprep.subr.bf16.mxu0 0
    %204 = vmatpush1.bf16.msra.mxu0 0
    %205 = vmatprep.subr.bf16.mxu0 0
    %206 = vmatpush1.bf16.msra.mxu0 0
    %207 = vmatprep.subr.bf16.mxu0 0
    %208 = vmatpush1.bf16.msra.mxu0 0
    %209 = vmatprep.subr.bf16.mxu0 0
    %210 = vmatpush1.bf16.msra.mxu0 0
    %211 = vmatprep.subr.bf16.mxu0 0
    %212 = vmatpush1.bf16.msra.mxu0 0
    %213 = vmatprep.subr.bf16.mxu0 0
    %214 = vmatpush1.bf16.msra.mxu0 0
    %215 = vmatprep.subr.bf16.mxu0 0
    %216 = vmatpush1.bf16.msra.mxu0 0
    %217 = vmatprep.subr.bf16.mxu0 0
    %218 = vmatpush1.bf16.msra.mxu0 0
    %219 = vmatprep.subr.bf16.mxu0 0
    %220 = vmatpush1.bf16.msra.mxu0 0
    %221 = vmatprep.subr.bf16.mxu0 0
    %222 = vmatpush1.bf16.msra.mxu0 0
    %223 = vmatprep.subr.bf16.mxu0 0
    %224 = vmatpush1.bf16.msra.mxu0 0
    %225 = vmatprep.subr.bf16.mxu0 0
    %226 = vmatpush1.bf16.msra.mxu0 0
    %227 = vmatprep.subr.bf16.mxu0 0
    %228 = vmatpush1.bf16.msra.mxu0 0
    %229 = vmatprep.mubr.bf16.mxu0 0
    %230 = vmatmul.mubr.bf16.gmra.mrb[0].mxu0 %v192
    %v231 = vpop.f32.mrb[0].mxu0
    %v232 = vadd.f32 0.0, %v231
    %v233 = vpop.f32.mrb[0].mxu0
    %v234 = vpop.f32.mrb[0].mxu0
    %v235 = vpop.f32.mrb[0].mxu0
    %236 = vdwg.mxu0
    %v237 = vsub.f32 %v138, %v185
    %v238 = vld [vmem:[%s5] sm:$0xff]
    %240 = vset.pattern.permute.xlu0 0
    %241 = vperm.xlu0 %240, %v238
    %v242 = vpop.permute.xlu0 %241
    %v244 = vadd.f32 %v237, %v242
    %v245 = vsub.f32 %v232, %v138
    %v246 = vsub.f32 %v245, %v185
    %v247 = vld [vmem:[%s6] sm:$0xff]
    %249 = vset.pattern.permute.xlu0 0
    %250 = vperm.xlu0 %249, %v247
    %v251 = vpop.permute.xlu0 %250
    %v253 = vadd.f32 %v246, %v251
    %254 = vst.msk [vmem:[#allocation2] sm:$0xff] %vm77, %v244
    %255 = vst.msk [vmem:[#allocation4] sm:$0xff] %vm77, %v253
    %257 = vrot.lane.b32.xlu0 %v244, 114
    %v258 = vpop.permute.xlu0 %257
    %s260 = scalar_lea.vmem [#allocation2], 8
    %261 = vst.msk [vmem:[%s260] sm:$0xff] %vm77, %v258
    %263 = vrot.lane.b32.xlu0 %v253, 114
    %v264 = vpop.permute.xlu0 %263
    %s266 = scalar_lea.vmem [#allocation4], 8
    %267 = vst.msk [vmem:[%s266] sm:$0xff] %vm77, %v264
    // Predicated region
    $region30: #{tpu_custom_call.1} parent=1 // pred_check
      _
    $region31: #{tpu_custom_call.1} parent=1 // pred_check_branch
      %269 = sbr.rel (0) target = $region33
    $region32: #{tpu_custom_call.1} parent=1 // pred_region
      %s271 = ssub.s32 256, 256
      %272 = vsyncadd [#allocation3], %s271
      %s273 = sshll.u32 [#allocation2], 4
      %s274 = int_to_ptr.vmem [resolvable:$true] %s273
      %279 = dma.vmem_to_hbm [thread:$0]  %s274, 256, %s7, [#allocation3], 128, 128, 8
    $region33: #{tpu_custom_call.1} parent=1 // pred_fallthru
      _
    // Predicated region
    $region34: #{tpu_custom_call.1} parent=1 // pred_check
      _
    $region35: #{tpu_custom_call.1} parent=1 // pred_check_branch
      %281 = sbr.rel (0) target = $region37
    $region36: #{tpu_custom_call.1} parent=1 // pred_region
      %s283 = ssub.s32 256, 256
      %284 = vsyncadd [#allocation5], %s283
      %s285 = sshll.u32 [#allocation4], 4
      %s286 = int_to_ptr.vmem [resolvable:$true] %s285
      %291 = dma.vmem_to_hbm [thread:$0]  %s286, 256, %s8, [#allocation5], 128, 128, 8
    $region37: #{tpu_custom_call.1} parent=1 // pred_fallthru
      _
    // Predicated region
    $region38: #{tpu_custom_call.1} parent=1 // pred_check
      _
    $region39: #{tpu_custom_call.1} parent=1 // pred_check_branch
      %293 = sbr.rel (0) target = $region41
    $region40: #{tpu_custom_call.1} parent=1 // pred_region
      %294 = dma.done [#allocation3], 256
    $region41: #{tpu_custom_call.1} parent=1 // pred_fallthru
      _
    // Predicated region
    $region42: #{tpu_custom_call.1} parent=1 // pred_check
      _
    $region43: #{tpu_custom_call.1} parent=1 // pred_check_branch
      %296 = sbr.rel (0) target = $region45
    $region44: #{tpu_custom_call.1} parent=1 // pred_region
      %297 = dma.done [#allocation5], 256
    $region45: #{tpu_custom_call.1} parent=1 // pred_fallthru
      _
    %298 = vsyncpa [#allocation3], 1
    %299 = vsyncpa [#allocation5], 1

</llo_original>
